<compile_context>
chip_gen: v6e
topology: v6e:2x2x1
jax: 0.10.0
libtpu: 0.0.40
codegen_flags: <defaults>
</compile_context>

<pallas_src>
import functools

import jax
import jax.numpy as jnp
from jax.experimental import pallas as pl
from jax.experimental.pallas import tpu as pltpu


def _grad_loss_kernel(x_ref, t_ref, o_ref, *, bb, d, h, w):
    hw = h * w

    # Loop-invariant validity masks, built once per grid step (cheap VPU work;
    # hoisted out of the fori_loop because JAX does not CSE broadcast_in_dim).
    row = jax.lax.broadcasted_iota(jnp.int32, (d, hw), 0)   # depth index
    col = jax.lax.broadcasted_iota(jnp.int32, (d, hw), 1)   # fused h*w index
    d_valid = row < (d - 1)                  # last depth row has no +1 neighbour
    h_valid = col < (h - 1) * w              # last H row has no +w neighbour
    w_valid = (col % w) < (w - 1)            # last lane of each W row invalid
    zero = jnp.zeros((d, hw), jnp.float32)

    def body(i, acc):
        # One (D, H*W) slab at a time keeps VMEM temporaries bounded.
        # diff(x) - diff(t) == diff(x - t): compute the error slab once.
        e = x_ref[i].astype(jnp.float32) - t_ref[i].astype(jnp.float32)
        # Neighbour slabs via full-width XLU rotations (no misaligned slices).
        e_d = pltpu.roll(e, shift=d - 1, axis=0)     # row r  -> e[(r + 1) % d]
        e_h = pltpu.roll(e, shift=hw - w, axis=1)    # lane j -> e[:, (j + w) % hw]
        e_w = pltpu.roll(e, shift=hw - 1, axis=1)    # lane j -> e[:, (j + 1) % hw]
        dd = e - e_d
        hd = e - e_h
        wd = e - e_w
        acc = acc + jnp.where(d_valid, dd * dd, zero)
        acc = acc + jnp.where(h_valid, hd * hd, zero)
        acc = acc + jnp.where(w_valid, wd * wd, zero)
        return acc

    acc = jax.lax.fori_loop(0, bb, body, zero, unroll=bool(bb <= 8))

    # Lane-dense per-step partial sums; cross-lane reduce happens in wrapper.
    o_ref[0] = acc


def _pick_block_batch(nc, vol_bytes, target_bytes):
    """Largest divisor of nc with bb*vol_bytes <= target_bytes, capped so the
    grid keeps >= ~4 steps (v7x megacore + pipeline prologue/epilogue)."""
    budget = max(1, target_bytes // max(vol_bytes, 1))
    cap = nc // 4 if nc >= 4 else 1
    cap = max(cap, 1)
    best = 1
    for bb in range(1, nc + 1):
        if nc % bb == 0 and bb <= budget and bb <= cap:
            best = bb
    return best


def gradient_loss(inp, tgt, *, block_bytes=4 << 20):
    assert inp.shape == tgt.shape and inp.ndim == 5
    n, c, d, h, w = inp.shape
    nc = n * c
    hw = h * w

    # Lane-dense view: fused H*W on the lane axis, D on the sublane axis.
    x = inp.reshape(nc, d, hw)
    t = tgt.reshape(nc, d, hw)

    # Budget in f32 bytes (covers bf16 inputs that are upcast inside the kernel).
    vol_bytes_f32 = d * hw * 4
    bb = _pick_block_batch(nc, vol_bytes_f32, block_bytes)
    g = nc // bb                      # bb divides nc exactly: no padding copies

    # VMEM sizing: 2 inputs x 2 pipeline buffers + 2 output buffers + slab temps.
    in_block_bytes = bb * d * hw * x.dtype.itemsize
    out_block_bytes = d * hw * 4
    vmem_need = 4 * in_block_bytes + 2 * out_block_bytes + 12 * d * hw * 4
    vmem_limit = int(min(max(vmem_need + (4 << 20), 16 << 20), 32 << 20))

    elems = nc * d * hw
    cost = pl.CostEstimate(
        flops=14 * elems,
        transcendentals=0,
        bytes_accessed=2 * elems * x.dtype.itemsize + g * out_block_bytes,
    )

    partials = pl.pallas_call(
        functools.partial(_grad_loss_kernel, bb=bb, d=d, h=h, w=w),
        out_shape=jax.ShapeDtypeStruct((g, d, hw), jnp.float32),
        grid_spec=pltpu.PrefetchScalarGridSpec(
            num_scalar_prefetch=0,
            grid=(g,),
            in_specs=[
                pl.BlockSpec((bb, d, hw), lambda i: (i, 0, 0)),
                pl.BlockSpec((bb, d, hw), lambda i: (i, 0, 0)),
            ],
            out_specs=pl.BlockSpec((1, d, hw), lambda i: (i, 0, 0)),
        ),
        compiler_params=pltpu.CompilerParams(
            dimension_semantics=("parallel",),
            vmem_limit_bytes=vmem_limit,
        ),
        cost_estimate=cost,
    )(x, t)

    # pos/neg symmetry -> factor of 2; denominator is the total element count
    # of the six concatenated gradient tensors.
    num = 2.0 * jnp.sum(partials)
    den = float(n * c * (2 * (d - 1) * h * w
                         + 2 * d * (h - 1) * w
                         + 2 * d * h * (w - 1)))
    return num / den


def gradient_loss_ref(inp, tgt):
    """Pure-JAX reference of the intended semantics."""
    n, c, d, h, w = inp.shape
    di = inp[:, :, :-1] - inp[:, :, 1:]
    dt = tgt[:, :, :-1] - tgt[:, :, 1:]
    hi = inp[:, :, :, :-1] - inp[:, :, :, 1:]
    ht = tgt[:, :, :, :-1] - tgt[:, :, :, 1:]
    wi = inp[:, :, :, :, :-1] - inp[:, :, :, :, 1:]
    wt = tgt[:, :, :, :, :-1] - tgt[:, :, :, :, 1:]
    num = 2.0 * (jnp.sum((di - dt) ** 2)
                 + jnp.sum((hi - ht) ** 2)
                 + jnp.sum((wi - wt) ** 2))
    den = n * c * (2 * (d - 1) * h * w + 2 * d * (h - 1) * w
                   + 2 * d * h * (w - 1))
    return num / den


if __name__ == "__main__":
    key = jax.random.PRNGKey(0)
    k1, k2 = jax.random.split(key)
    # Small 5D volumes: (N, C, D, H, W); H*W = 128 -> lane-dense last axis.
    inp = jax.random.normal(k1, (2, 4, 8, 8, 16), dtype=jnp.float32)
    tgt = jax.random.normal(k2, (2, 4, 8, 8, 16), dtype=jnp.float32)

    loss = jax.block_until_ready(gradient_loss(inp, tgt))
    ref = jax.block_until_ready(gradient_loss_ref(inp, tgt))

    assert jnp.allclose(loss, ref, rtol=1e-5, atol=1e-6), (loss, ref)
    print("KERNEL_OK")
</pallas_src>

<mosaic_0001>
module attributes {stable_mosaic.version = 11 : i64} {
  func.func @_grad_loss_kernel(%arg0: i32, %arg1: memref<2x8x128xf32, #tpu.memory_space<vmem>>, %arg2: memref<2x8x128xf32, #tpu.memory_space<vmem>>, %arg3: memref<1x8x128xf32, #tpu.memory_space<vmem>>) attributes {dimension_semantics = [#tpu.dimension_semantics<parallel>], iteration_bounds = array<i64: 4>, scalar_prefetch = 0 : i64, scratch_operands = 0 : i64, tpu.core_type = #tpu.core_type<tc>, window_params = [{transform_indices = @transform_0, window_bounds = array<i64: 2, 8, 128>}, {transform_indices = @transform_1, window_bounds = array<i64: 2, 8, 128>}, {transform_indices = @transform_2, window_bounds = array<i64: 1, 8, 128>}]} {
    %0 = tpu.iota {dimensions = array<i32: 0>} : vector<8x128xi32>
    %1 = tpu.iota {dimensions = array<i32: 1>} : vector<8x128xi32>
    %c7_i32 = arith.constant 7 : i32
    %2 = vector.broadcast %c7_i32 : i32 to vector<8x128xi32>
    %3 = arith.cmpi slt, %0, %2 : vector<8x128xi32>
    %c112_i32 = arith.constant 112 : i32
    %4 = vector.broadcast %c112_i32 : i32 to vector<8x128xi32>
    %5 = arith.cmpi slt, %1, %4 : vector<8x128xi32>
    %c16_i32 = arith.constant 16 : i32
    %c0_i32 = arith.constant 0 : i32
    %6 = arith.cmpi eq, %c16_i32, %c0_i32 : i32
    %c1_i32 = arith.constant 1 : i32
    %7 = arith.select %6, %c1_i32, %c16_i32 : i32
    %8 = vector.broadcast %7 : i32 to vector<8x128xi32>
    %9 = arith.remsi %1, %8 : vector<8x128xi32>
    %c0_i32_0 = arith.constant 0 : i32
    %10 = vector.broadcast %c0_i32_0 : i32 to vector<8x128xi32>
    %11 = arith.cmpi ne, %9, %10 : vector<8x128xi32>
    %c0_i32_1 = arith.constant 0 : i32
    %12 = vector.broadcast %c0_i32_1 : i32 to vector<8x128xi32>
    %13 = arith.cmpi slt, %9, %12 : vector<8x128xi32>
    %c0_i32_2 = arith.constant 0 : i32
    %14 = arith.cmpi slt, %7, %c0_i32_2 : i32
    %15 = vector.broadcast %14 : i1 to vector<8x128xi1>
    %16 = vector.broadcast %15 : vector<8x128xi1> to vector<8x128xi1>
    %17 = arith.xori %13, %16 : vector<8x128xi1>
    %18 = arith.andi %17, %11 : vector<8x128xi1>
    %19 = vector.broadcast %7 : i32 to vector<8x128xi32>
    %20 = arith.addi %9, %19 : vector<8x128xi32>
    %21 = arith.select %18, %20, %9 : vector<8x128xi1>, vector<8x128xi32>
    %c15_i32 = arith.constant 15 : i32
    %22 = vector.broadcast %c15_i32 : i32 to vector<8x128xi32>
    %23 = arith.cmpi slt, %21, %22 : vector<8x128xi32>
    %cst = arith.constant 0.000000e+00 : f32
    %24 = vector.broadcast %cst : f32 to vector<8x128xf32>
    %c0_i32_3 = arith.constant 0 : i32
    %25 = arith.index_cast %c0_i32_3 : i32 to index
    %c0 = arith.constant 0 : index
    %c0_4 = arith.constant 0 : index
    %26 = vector.load %arg1[%25, %c0, %c0_4] : memref<2x8x128xf32, #tpu.memory_space<vmem>>, vector<1x8x128xf32>
    %27 = vector.shape_cast %26 : vector<1x8x128xf32> to vector<8x128xf32>
    %28 = arith.index_cast %c0_i32_3 : i32 to index
    %c0_5 = arith.constant 0 : index
    %c0_6 = arith.constant 0 : index
    %29 = vector.load %arg2[%28, %c0_5, %c0_6] : memref<2x8x128xf32, #tpu.memory_space<vmem>>, vector<1x8x128xf32>
    %30 = vector.shape_cast %29 : vector<1x8x128xf32> to vector<8x128xf32>
    %31 = arith.subf %27, %30 : vector<8x128xf32>
    %c7_i32_7 = arith.constant 7 : i32
    %32 = tpu.dynamic_rotate %31 by %c7_i32_7 dim 0 : vector<8x128xf32>, i32 -> vector<8x128xf32>
    %c112_i32_8 = arith.constant 112 : i32
    %33 = tpu.dynamic_rotate %31 by %c112_i32_8 dim 1 : vector<8x128xf32>, i32 -> vector<8x128xf32>
    %c127_i32 = arith.constant 127 : i32
    %34 = tpu.dynamic_rotate %31 by %c127_i32 dim 1 : vector<8x128xf32>, i32 -> vector<8x128xf32>
    %35 = arith.subf %31, %32 : vector<8x128xf32>
    %36 = arith.subf %31, %33 : vector<8x128xf32>
    %37 = arith.subf %31, %34 : vector<8x128xf32>
    %38 = arith.mulf %35, %35 : vector<8x128xf32>
    %39 = arith.select %3, %38, %24 : vector<8x128xi1>, vector<8x128xf32>
    %40 = arith.addf %24, %39 : vector<8x128xf32>
    %41 = arith.mulf %36, %36 : vector<8x128xf32>
    %42 = arith.select %5, %41, %24 : vector<8x128xi1>, vector<8x128xf32>
    %43 = arith.addf %40, %42 : vector<8x128xf32>
    %44 = arith.mulf %37, %37 : vector<8x128xf32>
    %45 = arith.select %23, %44, %24 : vector<8x128xi1>, vector<8x128xf32>
    %46 = arith.addf %43, %45 : vector<8x128xf32>
    %c1_i32_9 = arith.constant 1 : i32
    %47 = arith.index_cast %c1_i32_9 : i32 to index
    %c0_10 = arith.constant 0 : index
    %c0_11 = arith.constant 0 : index
    %48 = vector.load %arg1[%47, %c0_10, %c0_11] : memref<2x8x128xf32, #tpu.memory_space<vmem>>, vector<1x8x128xf32>
    %49 = vector.shape_cast %48 : vector<1x8x128xf32> to vector<8x128xf32>
    %50 = arith.index_cast %c1_i32_9 : i32 to index
    %c0_12 = arith.constant 0 : index
    %c0_13 = arith.constant 0 : index
    %51 = vector.load %arg2[%50, %c0_12, %c0_13] : memref<2x8x128xf32, #tpu.memory_space<vmem>>, vector<1x8x128xf32>
    %52 = vector.shape_cast %51 : vector<1x8x128xf32> to vector<8x128xf32>
    %53 = arith.subf %49, %52 : vector<8x128xf32>
    %c7_i32_14 = arith.constant 7 : i32
    %54 = tpu.dynamic_rotate %53 by %c7_i32_14 dim 0 : vector<8x128xf32>, i32 -> vector<8x128xf32>
    %c112_i32_15 = arith.constant 112 : i32
    %55 = tpu.dynamic_rotate %53 by %c112_i32_15 dim 1 : vector<8x128xf32>, i32 -> vector<8x128xf32>
    %c127_i32_16 = arith.constant 127 : i32
    %56 = tpu.dynamic_rotate %53 by %c127_i32_16 dim 1 : vector<8x128xf32>, i32 -> vector<8x128xf32>
    %57 = arith.subf %53, %54 : vector<8x128xf32>
    %58 = arith.subf %53, %55 : vector<8x128xf32>
    %59 = arith.subf %53, %56 : vector<8x128xf32>
    %60 = arith.mulf %57, %57 : vector<8x128xf32>
    %61 = arith.select %3, %60, %24 : vector<8x128xi1>, vector<8x128xf32>
    %62 = arith.addf %46, %61 : vector<8x128xf32>
    %63 = arith.mulf %58, %58 : vector<8x128xf32>
    %64 = arith.select %5, %63, %24 : vector<8x128xi1>, vector<8x128xf32>
    %65 = arith.addf %62, %64 : vector<8x128xf32>
    %66 = arith.mulf %59, %59 : vector<8x128xf32>
    %67 = arith.select %23, %66, %24 : vector<8x128xi1>, vector<8x128xf32>
    %68 = arith.addf %65, %67 : vector<8x128xf32>
    %c2_i32 = arith.constant 2 : i32
    %c0_17 = arith.constant 0 : index
    %c0_18 = arith.constant 0 : index
    %c0_19 = arith.constant 0 : index
    %69 = vector.load %arg3[%c0_17, %c0_18, %c0_19] : memref<1x8x128xf32, #tpu.memory_space<vmem>>, vector<1x8x128xf32>
    %70 = vector.shape_cast %69 : vector<1x8x128xf32> to vector<8x128xf32>
    %71 = vector.shape_cast %68 : vector<8x128xf32> to vector<1x8x128xf32>
    tpu.vector_store %arg3[%c0_17, %c0_18, %c0_19], %71 {strides = array<i32>} : memref<1x8x128xf32, #tpu.memory_space<vmem>>, vector<1x8x128xf32>,
    return
  }
  func.func @transform_0(%arg0: i32) -> (i32, i32, i32) {
    %c0_i32 = arith.constant 0 : i32
    %c0_i32_0 = arith.constant 0 : i32
    %c0_i32_1 = arith.constant 0 : i32
    return %arg0, %c0_i32, %c0_i32_0 : i32, i32, i32
  }
  func.func @transform_1(%arg0: i32) -> (i32, i32, i32) {
    %c0_i32 = arith.constant 0 : i32
    %c0_i32_0 = arith.constant 0 : i32
    %c0_i32_1 = arith.constant 0 : i32
    return %arg0, %c0_i32, %c0_i32_0 : i32, i32, i32
  }
  func.func @transform_2(%arg0: i32) -> (i32, i32, i32) {
    %c0_i32 = arith.constant 0 : i32
    %c0_i32_0 = arith.constant 0 : i32
    %c0_i32_1 = arith.constant 0 : i32
    return %arg0, %c0_i32, %c0_i32_0 : i32, i32, i32
  }
}

</mosaic_0001>

<llo_original>
// kernel: tpu_custom_call.1
$region0: #{tpu_custom_call.1}
  #allocation0 [shape = 'u32[]', space=smem, size = 0x4, offset = 0x4, fixed_abs, tag = 'smem constant byte address 0x4 - core index']
  #allocation1 [shape = 'u32[144,128]{1,0:T(1,128)}', space=vmem, size = 0x12000, scoped, tag = 'internal scratch']
  %s0 = inlined_call_operand.hbm [shape: f32[8,8,128], index: 0, kind: input, shape index: {}]
  %s1 = inlined_call_operand.hbm [shape: f32[8,8,128], index: 1, kind: input, shape index: {}]
  %s2 = inlined_call_operand.hbm [shape: f32[4,8,128], index: 2, kind: output, shape index: {}]
  %s3 = sld [smem:[#allocation0]]
  $region49: #{tpu_custom_call.1} parent=0
    _
  %s5 = ssub.s32 1, %s3
  %s6 = scalar_select 0, %s5, %s3
  $region1: #{tpu_custom_call.1} parent=0
    #allocation2 [shape = 'u8[16384]{0}', space=vmem, size = 0x4000, scoped, tag = 'input window, operand 0']
    #allocation3 [shape = 's32[2]{0}', space=sflag, size = 0x8, scoped, tag = 'scoped memory for tpu_custom_call.1']
    #allocation4 [shape = 's32[2]{0}', space=sflag, size = 0x8, scoped, tag = 'scoped memory for tpu_custom_call.1']
    #allocation5 [shape = 'u8[16384]{0}', space=vmem, size = 0x4000, scoped, tag = 'input window, operand 1']
    #allocation6 [shape = 's32[2]{0}', space=sflag, size = 0x8, scoped, tag = 'scoped memory for tpu_custom_call.1']
    #allocation7 [shape = 'u8[8192]{0}', space=vmem, size = 0x2000, scoped, tag = 'output window, operand 0']
    %7 = vsyncpa [#allocation3], 0
    %s8 = scalar_lea.sflag [#allocation3], 1
    %9 = vsyncpa %s8, 0
    %10 = vsyncpa [#allocation6], 0
    %s11 = scalar_lea.sflag [#allocation6], 1
    %12 = vsyncpa %s11, 0
    %13 = vsyncpa [#allocation4], 0
    %s14 = scalar_lea.sflag [#allocation4], 1
    %15 = vsyncpa %s14, 0
    loop: start=0, step=1, limit=6
    $region2: #{tpu_custom_call.1} parent=1 // loop_pre_header
      _
    $region3: #{tpu_custom_call.1} parent=1 // loop_header
      %s17 = sphi 0, %s21
      %p18 = scmp.ge.s32.totalorder %s17, 6
      %s27 = sphi 0, %s29
      %s30 = sphi 0, %s27
      %s31 = sphi 0, %s30
      %s47 = sphi 0, %s31
      %s53 = sphi 0, %s55
      %s56 = sphi 0, %s53
      %s57 = sphi 0, %s56
      %s73 = sphi 0, %s57
      %s79 = sphi 0, %s81
      %s82 = sphi 0, %s79
      %s83 = sphi 0, %s82
      %s99 = sphi 0, %s83
    $region4: #{tpu_custom_call.1} parent=1 // loop_header_branch
      %20 = sbr.rel (%p18) target = $region8
    $region5: #{tpu_custom_call.1} parent=1 // loop_body
      %s22 = ssub.s32 %s17, 1
      %s23 = ssub.s32 %s17, 2
      %s24 = sadd.s32 %s17, 1
      %s25 = ssub.s32 %s17, %s24
      %p26 = scmp.eq.s32.totalorder %s25, 0
      %s28 = sadd.s32 %s27, 1
      %s29 = scalar_select %p26, %s27, %s28
      %p32 = pneg %p26
      %p33 = scmp.eq.s32.totalorder %s17, 3
      %p34 = por %p32, %p33
      %p35 = scmp.ne.s32.totalorder %s27, %s30
      %p36 = scmp.eq.s32.totalorder %s17, 0
      %p37 = por %p35, %p36
      %p38 = scmp.ne.s32.totalorder %s27, %s30
      %p39 = scmp.eq.s32.totalorder %s22, 3
      %p40 = por %p38, %p39
      %p41 = scmp.ne.s32.totalorder %s30, %s31
      %p42 = scmp.eq.s32.totalorder %s22, 0
      %p43 = por %p41, %p42
      %p44 = scmp.ne.s32.totalorder %s30, %s31
      %p45 = scmp.eq.s32.totalorder %s23, 3
      %p46 = por %p44, %p45
      %p48 = scmp.ne.s32.totalorder %s31, %s47
      %p49 = scmp.eq.s32.totalorder %s23, 0
      %p50 = por %p48, %p49
      %s51 = ssub.s32 %s17, %s24
      %p52 = scmp.eq.s32.totalorder %s51, 0
      %s54 = sadd.s32 %s53, 1
      %s55 = scalar_select %p52, %s53, %s54
      %p58 = pneg %p52
      %p59 = scmp.eq.s32.totalorder %s17, 3
      %p60 = por %p58, %p59
      %p61 = scmp.ne.s32.totalorder %s53, %s56
      %p62 = scmp.eq.s32.totalorder %s17, 0
      %p63 = por %p61, %p62
      %p64 = scmp.ne.s32.totalorder %s53, %s56
      %p65 = scmp.eq.s32.totalorder %s22, 3
      %p66 = por %p64, %p65
      %p67 = scmp.ne.s32.totalorder %s56, %s57
      %p68 = scmp.eq.s32.totalorder %s22, 0
      %p69 = por %p67, %p68
      %p70 = scmp.ne.s32.totalorder %s56, %s57
      %p71 = scmp.eq.s32.totalorder %s23, 3
      %p72 = por %p70, %p71
      %p74 = scmp.ne.s32.totalorder %s57, %s73
      %p75 = scmp.eq.s32.totalorder %s23, 0
      %p76 = por %p74, %p75
      %s77 = ssub.s32 %s17, %s24
      %p78 = scmp.eq.s32.totalorder %s77, 0
      %s80 = sadd.s32 %s79, 1
      %s81 = scalar_select %p78, %s79, %s80
      %p84 = pneg %p78
      %p85 = scmp.eq.s32.totalorder %s17, 3
      %p86 = por %p84, %p85
      %p87 = scmp.ne.s32.totalorder %s79, %s82
      %p88 = scmp.eq.s32.totalorder %s17, 0
      %p89 = por %p87, %p88
      %p90 = scmp.ne.s32.totalorder %s79, %s82
      %p91 = scmp.eq.s32.totalorder %s22, 3
      %p92 = por %p90, %p91
      %p93 = scmp.ne.s32.totalorder %s82, %s83
      %p94 = scmp.eq.s32.totalorder %s22, 0
      %p95 = por %p93, %p94
      %p96 = scmp.ne.s32.totalorder %s82, %s83
      %p97 = scmp.eq.s32.totalorder %s23, 3
      %p98 = por %p96, %p97
      %p100 = scmp.ne.s32.totalorder %s83, %s99
      %p101 = scmp.eq.s32.totalorder %s23, 0
      %p102 = por %p100, %p101
      %p103 = scmp.le.s32.totalorder 1, %s17
      %p104 = scmp.lt.s32.totalorder %s17, 5
      %p105 = pnand %p103, %p104
      %p106 = pneg %p105
      // Predicated region
      $region9: #{tpu_custom_call.1} parent=5 // pred_check
        _
      $region10: #{tpu_custom_call.1} parent=5 // pred_check_branch
        %108 = sbr.rel (%p105) target = $region12
      $region11: #{tpu_custom_call.1} parent=5 // pred_region
        %s109 = ssub.s32 %s17, 1
      $region12: #{tpu_custom_call.1} parent=5 // pred_fallthru
        _
      %p110 = scmp.lt.s32.totalorder %s17, 4
      // Predicated region
      $region13: #{tpu_custom_call.1} parent=5 // pred_check
        %p111 = pneg %p110
      $region14: #{tpu_custom_call.1} parent=5 // pred_check_branch
        %113 = sbr.rel (%p111) target = $region16
      $region15: #{tpu_custom_call.1} parent=5 // pred_region
        // Predicated region
        $region17: #{tpu_custom_call.1} parent=15 // pred_check
          %p114 = pneg %p37
        $region18: #{tpu_custom_call.1} parent=15 // pred_check_branch
          %116 = sbr.rel (%p114) target = $region20
        $region19: #{tpu_custom_call.1} parent=15 // pred_region
          %s117 = sand.u32 %s27, 1
          %s118 = scalar_lea.sflag [#allocation3], %s117
          %s119 = sand.u32 %s27, 1
          %s120 = smul.addr %s119, 16
          %s121 = scalar_lea.vmem [#allocation2], %s120
          %s122 = smul.u32 2, %s17
          %s124 = ssub.s32 256, 256
          %125 = vsyncadd %s118, %s124
          %s126 = smul.addr %s122, 128
          %s127 = scalar_lea.hbm %s0, %s126
          %s128 = sshll.u32 %s121, 4
          %s129 = int_to_ptr.vmem [resolvable:$true] %s128
          %134 = dma.hbm_to_vmem [thread:$0]  %s127, 256, %s129, %s118, 128, 128, 8
        $region20: #{tpu_custom_call.1} parent=15 // pred_fallthru
          _
        // Predicated region
        $region21: #{tpu_custom_call.1} parent=15 // pred_check
          %p135 = pneg %p63
        $region22: #{tpu_custom_call.1} parent=15 // pred_check_branch
          %137 = sbr.rel (%p135) target = $region24
        $region23: #{tpu_custom_call.1} parent=15 // pred_region
          %s138 = sand.u32 %s53, 1
          %s139 = scalar_lea.sflag [#allocation6], %s138
          %s140 = sand.u32 %s53, 1
          %s141 = smul.addr %s140, 16
          %s142 = scalar_lea.vmem [#allocation5], %s141
          %s143 = smul.u32 2, %s17
          %s145 = ssub.s32 256, 256
          %146 = vsyncadd %s139, %s145
          %s147 = smul.addr %s143, 128
          %s148 = scalar_lea.hbm %s1, %s147
          %s149 = sshll.u32 %s142, 4
          %s150 = int_to_ptr.vmem [resolvable:$true] %s149
          %155 = dma.hbm_to_vmem [thread:$0]  %s148, 256, %s150, %s139, 128, 128, 8
        $region24: #{tpu_custom_call.1} parent=15 // pred_fallthru
          _
      $region16: #{tpu_custom_call.1} parent=5 // pred_fallthru
        _
      %p156 = scmp.le.s32.totalorder 1, %s17
      %p157 = scmp.lt.s32.totalorder %s17, 5
      %p158 = pnand %p156, %p157
      %p159 = pneg %p158
      // Predicated region
      $region25: #{tpu_custom_call.1} parent=5 // pred_check
        _
      $region26: #{tpu_custom_call.1} parent=5 // pred_check_branch
        %161 = sbr.rel (%p158) target = $region28
      $region27: #{tpu_custom_call.1} parent=5 // pred_region
        %s162 = ssub.s32 %s17, 1
        %s163 = sand.u32 %s30, 1
        %s164 = scalar_lea.sflag [#allocation3], %s163
        %s165 = sand.u32 %s30, 1
        %s166 = smul.addr %s165, 16
        %s167 = scalar_lea.vmem [#allocation2], %s166
        // Predicated region
        $region29: #{tpu_custom_call.1} parent=27 // pred_check
          %p168 = pneg %p43
        $region30: #{tpu_custom_call.1} parent=27 // pred_check_branch
          %170 = sbr.rel (%p168) target = $region32
        $region31: #{tpu_custom_call.1} parent=27 // pred_region
          %171 = dma.done %s164, 256
        $region32: #{tpu_custom_call.1} parent=27 // pred_fallthru
          _
        %s172 = sand.u32 %s56, 1
        %s173 = scalar_lea.sflag [#allocation6], %s172
        %s174 = sand.u32 %s56, 1
        %s175 = smul.addr %s174, 16
        %s176 = scalar_lea.vmem [#allocation5], %s175
        // Predicated region
        $region33: #{tpu_custom_call.1} parent=27 // pred_check
          %p177 = pneg %p69
        $region34: #{tpu_custom_call.1} parent=27 // pred_check_branch
          %179 = sbr.rel (%p177) target = $region36
        $region35: #{tpu_custom_call.1} parent=27 // pred_region
          %180 = dma.done %s173, 256
        $region36: #{tpu_custom_call.1} parent=27 // pred_fallthru
          _
        %s181 = sand.u32 %s30, 1
        %s182 = scalar_lea.sflag [#allocation3], %s181
        %s183 = sand.u32 %s30, 1
        %s184 = smul.addr %s183, 16
        %s185 = scalar_lea.vmem [#allocation2], %s184
        %p186 = pneg %p43
        %p187 = pneg %p40
        %s188 = sand.u32 %s56, 1
        %s189 = scalar_lea.sflag [#allocation6], %s188
        %s190 = sand.u32 %s56, 1
        %s191 = smul.addr %s190, 16
        %s192 = scalar_lea.vmem [#allocation5], %s191
        %p193 = pneg %p69
        %p194 = pneg %p66
        %p195 = pneg %p95
        %p196 = pneg %p92
        %s197 = sand.u32 %s82, 1
        %s198 = scalar_lea.sflag [#allocation4], %s197
        %s199 = sand.u32 %s82, 1
        %s200 = smul.addr %s199, 8
        %s201 = scalar_lea.vmem [#allocation7], %s200
        %s202 = smul.u32 2, %s22
        %s203 = smul.u32 2, %s22
        %v204 = vlaneseq
        %v205 = vshrl.u32 %v204, 7
        %v206 = vlaneseq
        %v207 = vand.u32 %v206, 127
        %vm208 = vcmp.lt.s32.totalorder %v205, 7
        %vm209 = vcmp.lt.s32.totalorder %v207, 112
        %vm210 = vcmp.lt.s32.totalorder %v207, 0
        %v211 = vsub.s32 0, %v207
        %v212 = vsel %vm210, %v211, %v207
        %v213 = vshrl.u32 %v212, 4
        %v214 = vand.u32 %v212, 15
        %v215 = vsub.s32 0, %v214
        %v216 = vsel %vm210, %v215, %v214
        %vm217 = vcmp.ne.s32.totalorder %v216, 0
        %vm218 = vcmp.lt.s32.totalorder %v216, 0
        %vm219 = vmand %vm218, %vm217
        %v220 = vadd.s32 %v216, 16
        %v221 = vsel %vm219, %v220, %v216
        %vm222 = vcmp.lt.s32.totalorder %v221, 15
        %v223 = vld [vmem:[%s167] sm:$0xff]
        %v224 = vld [vmem:[%s176] sm:$0xff]
        %v225 = vsub.f32 %v223, %v224
        %v226 = vrot.slane %v225, 1
        %227 = vrot.lane.b32.xlu0 %v225, 112
        %v228 = vpop.permute.xlu0 %227
        %229 = vrot.lane.b32.xlu0 %v225, 127
        %v230 = vpop.permute.xlu0 %229
        %v231 = vsub.f32 %v225, %v226
        %v232 = vsub.f32 %v225, %v228
        %v233 = vsub.f32 %v225, %v230
        %v234 = vmul.f32 %v231, %v231
        %v235 = vsel %vm208, %v234, 0.0
        %v236 = vadd.f32 %v235, 0.0
        %v237 = vmul.f32 %v232, %v232
        %v238 = vsel %vm209, %v237, 0.0
        %v239 = vadd.f32 %v236, %v238
        %v240 = vmul.f32 %v233, %v233
        %v241 = vsel %vm222, %v240, 0.0
        %v242 = vadd.f32 %v239, %v241
        %s243 = scalar_lea.vmem %s167, 8 [#allocation2]
        %v244 = vld [vmem:[%s243] sm:$0xff]
        %s245 = scalar_lea.vmem %s176, 8 [#allocation5]
        %v246 = vld [vmem:[%s245] sm:$0xff]
        %v247 = vsub.f32 %v244, %v246
        %v248 = vrot.slane %v247, 1
        %249 = vrot.lane.b32.xlu0 %v247, 112
        %v250 = vpop.permute.xlu0 %249
        %251 = vrot.lane.b32.xlu0 %v247, 127
        %v252 = vpop.permute.xlu0 %251
        %v253 = vsub.f32 %v247, %v248
        %v254 = vsub.f32 %v247, %v250
        %v255 = vsub.f32 %v247, %v252
        %v256 = vmul.f32 %v253, %v253
        %v257 = vsel %vm208, %v256, 0.0
        %v258 = vadd.f32 %v242, %v257
        %v259 = vmul.f32 %v254, %v254
        %v260 = vsel %vm209, %v259, 0.0
        %v261 = vadd.f32 %v258, %v260
        %v262 = vmul.f32 %v255, %v255
        %v263 = vsel %vm222, %v262, 0.0
        %v264 = vadd.f32 %v261, %v263
        %265 = vst [vmem:[%s201] sm:$0xff] %v264
        %s266 = sand.u32 %s82, 1
        %s267 = scalar_lea.sflag [#allocation4], %s266
        %s268 = sand.u32 %s82, 1
        %s269 = smul.addr %s268, 8
        %s270 = scalar_lea.vmem [#allocation7], %s269
        // Predicated region
        $region37: #{tpu_custom_call.1} parent=27 // pred_check
          %p271 = pneg %p92
        $region38: #{tpu_custom_call.1} parent=27 // pred_check_branch
          %273 = sbr.rel (%p271) target = $region40
        $region39: #{tpu_custom_call.1} parent=27 // pred_region
          %s275 = ssub.s32 128, 128
          %276 = vsyncadd %s267, %s275
          %s277 = smul.addr %s22, 128
          %s278 = scalar_lea.hbm %s2, %s277
          %s280 = sshll.u32 %s270, 4
          %s281 = int_to_ptr.vmem [resolvable:$true] %s280
          %283 = dma.vmem_to_hbm [thread:$0]  %s281, 128, %s278, %s267
        $region40: #{tpu_custom_call.1} parent=27 // pred_fallthru
          _
      $region28: #{tpu_custom_call.1} parent=5 // pred_fallthru
        _
      %p284 = scmp.le.s32.totalorder 2, %s17
      // Predicated region
      $region41: #{tpu_custom_call.1} parent=5 // pred_check
        %p285 = pneg %p284
      $region42: #{tpu_custom_call.1} parent=5 // pred_check_branch
        %287 = sbr.rel (%p285) target = $region44
      $region43: #{tpu_custom_call.1} parent=5 // pred_region
        %s288 = ssub.s32 %s17, 2
        // Predicated region
        $region45: #{tpu_custom_call.1} parent=43 // pred_check
          %p289 = pneg %p98
        $region46: #{tpu_custom_call.1} parent=43 // pred_check_branch
          %291 = sbr.rel (%p289) target = $region48
        $region47: #{tpu_custom_call.1} parent=43 // pred_region
          %s292 = sand.u32 %s83, 1
          %s293 = scalar_lea.sflag [#allocation4], %s292
          %s294 = sand.u32 %s83, 1
          %s295 = smul.addr %s294, 8
          %s296 = scalar_lea.vmem [#allocation7], %s295
          %297 = dma.done %s293, 128
        $region48: #{tpu_custom_call.1} parent=43 // pred_fallthru
          _
      $region44: #{tpu_custom_call.1} parent=5 // pred_fallthru
        _
    $region6: #{tpu_custom_call.1} parent=1 // loop_footer
      %s21 = sadd.s32 1, %s17
    $region7: #{tpu_custom_call.1} parent=1 // loop_footer_branch
      %16 = sbr.rel target = $region3
    $region8: #{tpu_custom_call.1} parent=1 // loop_exit
      _
    %298 = vsyncpa [#allocation3], 1
    %s299 = scalar_lea.sflag [#allocation3], 1
    %300 = vsyncpa %s299, 1
    %301 = vsyncpa [#allocation6], 1
    %s302 = scalar_lea.sflag [#allocation6], 1
    %303 = vsyncpa %s302, 1
    %304 = vsyncpa [#allocation4], 1
    %s305 = scalar_lea.sflag [#allocation4], 1
    %306 = vsyncpa %s305, 1

</llo_original>
